<compile_context>
chip_gen: v7x
topology: tpu7x:2x2x1
jax: 0.10.0
libtpu: 0.0.40
codegen_flags: <defaults>
</compile_context>

<pallas_src>
import jax
import jax.numpy as jnp
from jax.experimental import pallas as pl
from jax.experimental.pallas import tpu as pltpu

# ------------------------------------------------------------------ config ---
IN_PLANES   = 4
OUT_PLANES  = 8
KERNEL_SIZE = 3
GROUPS      = 1
REDUCTION   = 0.0625
KERNEL_NUM  = 4
MIN_CHANNEL = 16
ATTN_CH     = max(int(IN_PLANES * REDUCTION), MIN_CHANNEL)   # = 16
TEMPERATURE = 1.0
BN_EPS      = 1e-5

B, H, W = 2, 16, 16
KK = KERNEL_SIZE * KERNEL_SIZE

# Fused head layout: lane offsets inside the single (B, HEAD_PAD) output slab.
CH_OFF   = 0
F_OFF    = CH_OFF + IN_PLANES        # 4
S_OFF    = F_OFF + OUT_PLANES        # 12
K_OFF    = S_OFF + KK                # 21
HEAD_N   = K_OFF + KERNEL_NUM        # 25 real columns
HEAD_PAD = 128                       # pad to a full lane width (lane-dense vst)


# ------------------------------------------------------------------ kernel ---
def attention_kernel(x_ref,        # (B, C_in*H*W)  bf16 lane-dense input slab
                     w1_ref,       # (C_in*H*W, A)  bf16, avgpool folded into fc weight
                     w2_ref,       # (A, HEAD_PAD)  f32 fused [ch|filter|spatial|kernel] weight
                     b2_ref,       # (1, HEAD_PAD)  f32 fused bias row (1/T pre-folded)
                     o_ref):       # (B, HEAD_PAD)  f32 fused lane-dense output slab
    # AdaptiveAvgPool2d(1) + fc(1x1, no bias) fused into a single matmul:
    # w1[c*HW + s, a] == w_fc[c, a] / (H*W).  bf16 operands, f32 accumulate.
    h = jnp.dot(x_ref[...], w1_ref[...],
                preferred_element_type=jnp.float32)                    # (B, A) f32

    # BatchNorm2d (training mode: batch stats, gamma=1, beta=0, biased var)
    mu  = jnp.mean(h, axis=0, keepdims=True)
    d   = h - mu
    var = jnp.mean(d * d, axis=0, keepdims=True)
    h   = d * jax.lax.rsqrt(var + BN_EPS)

    # ReLU
    h = jnp.maximum(h, 0.0)

    # One fused head projection for all four attentions.
    # 1/TEMPERATURE is already folded into w2/b2 at fuse time.
    z = jnp.dot(h, w2_ref[...], preferred_element_type=jnp.float32) + b2_ref[...]

    # Lane mask selecting the kernel-attention (softmax) columns.
    col    = jax.lax.broadcasted_iota(jnp.int32, z.shape, 1)
    k_mask = (col >= K_OFF) & (col < K_OFF + KERNEL_NUM)

    # Masked, numerically-stable softmax over the kernel-attention lanes.
    # Exact divide (not approx rcp): rows must sum to 1 to f32 precision since
    # they feed the downstream ODConv kernel-weight mixing.
    zk = jnp.where(k_mask, z, -jnp.inf)
    m  = jnp.max(zk, axis=-1, keepdims=True)
    e  = jnp.exp(zk - m)                       # exactly 0 outside the mask
    s  = jnp.sum(e, axis=-1, keepdims=True)
    sm = e / s

    # Sigmoid everywhere else (channel / filter / spatial); single dense store.
    o_ref[...] = jnp.where(k_mask, sm, jax.nn.sigmoid(z))


# ----------------------------------------------------------------- wrapper ---
def attention_forward(x, fused):
    """x: (B, C_in, H, W) float32 (NCHW, same as PyTorch)."""
    b, c, hh, ww = x.shape
    chw = c * hh * ww
    # Lane-dense (B, C_in*H*W) slab; bf16 matmul operand (f32 accumulation in
    # the kernel keeps parity close to the PyTorch f32 reference).
    x2 = x.reshape(b, chw).astype(jnp.bfloat16)

    vmem = pl.BlockSpec(memory_space=pltpu.MemorySpace.VMEM)

    # Advisory cost: two matmuls + elementwise transcendentals + tiny DMA.
    flops = 2 * b * chw * ATTN_CH + 2 * b * ATTN_CH * HEAD_PAD
    bytes_accessed = (x2.size * 2 + fused["w1"].size * 2
                      + fused["w2"].size * 4 + fused["b2"].size * 4
                      + b * HEAD_PAD * 4)
    cost = pl.CostEstimate(flops=flops,
                           transcendentals=b * HEAD_PAD,
                           bytes_accessed=bytes_accessed)

    out = pl.pallas_call(
        attention_kernel,
        out_shape=jax.ShapeDtypeStruct((b, HEAD_PAD), jnp.float32),
        in_specs=[vmem, vmem, vmem, vmem],
        out_specs=vmem,
        cost_estimate=cost,
    )(x2, fused["w1"], fused["w2"], fused["b2"])

    channel_att = out[:, CH_OFF:F_OFF].reshape(b, IN_PLANES, 1, 1)
    filter_att  = out[:, F_OFF:S_OFF].reshape(b, OUT_PLANES, 1, 1)
    spatial_att = out[:, S_OFF:K_OFF].reshape(b, 1, 1, 1, KERNEL_SIZE, KERNEL_SIZE)
    kernel_att  = out[:, K_OFF:HEAD_N].reshape(b, KERNEL_NUM, 1, 1, 1, 1)
    return channel_att, filter_att, spatial_att, kernel_att


# ------------------------------------------------------------- param setup ---
def init_params(key):
    """Deterministic kaiming-normal-like init (fan_out, relu), zero biases.
    Conv2d(Cin, Cout, 1) weights are stored transposed as (Cin, Cout)."""
    ks = jax.random.split(key, 5)

    def kaiming(k, fan_out, shape):
        std = (2.0 / fan_out) ** 0.5
        return std * jax.random.normal(k, shape, dtype=jnp.float32)

    return {
        "w_fc": kaiming(ks[0], ATTN_CH,    (IN_PLANES, ATTN_CH)),
        "w_ch": kaiming(ks[1], IN_PLANES,  (ATTN_CH, IN_PLANES)),
        "b_ch": jnp.zeros((1, IN_PLANES), jnp.float32),
        "w_f":  kaiming(ks[2], OUT_PLANES, (ATTN_CH, OUT_PLANES)),
        "b_f":  jnp.zeros((1, OUT_PLANES), jnp.float32),
        "w_s":  kaiming(ks[3], KK,         (ATTN_CH, KK)),
        "b_s":  jnp.zeros((1, KK), jnp.float32),
        "w_k":  kaiming(ks[4], KERNEL_NUM, (ATTN_CH, KERNEL_NUM)),
        "b_k":  jnp.zeros((1, KERNEL_NUM), jnp.float32),
    }


def fuse_params(params, hw):
    """One-time weight folding:
      w1: avgpool (1/hw) folded into the fc weight, replicated along spatial,
          stored bf16 (MXU-native operand; accumulation stays f32 in-kernel).
      w2/b2: four head projections concatenated, scaled by 1/TEMPERATURE
          (the reference divides every head's logits by temperature) and
          lane-padded to HEAD_PAD; kept f32 (tiny K=16 matmul, exact parity)."""
    w1 = (jnp.repeat(params["w_fc"], hw, axis=0)
          * jnp.float32(1.0 / hw)).astype(jnp.bfloat16)                  # (C_in*hw, A)

    inv_t = jnp.float32(1.0 / TEMPERATURE)
    w2 = jnp.concatenate(
        [params["w_ch"], params["w_f"], params["w_s"], params["w_k"]], axis=1) * inv_t
    w2 = jnp.pad(w2, ((0, 0), (0, HEAD_PAD - HEAD_N)))                   # (A, HEAD_PAD)

    b2 = jnp.concatenate(
        [params["b_ch"], params["b_f"], params["b_s"], params["b_k"]], axis=1) * inv_t
    b2 = jnp.pad(b2, ((0, 0), (0, HEAD_PAD - HEAD_N)))                   # (1, HEAD_PAD)

    return {"w1": w1, "w2": w2, "b2": b2}


if __name__ == "__main__":
    key = jax.random.PRNGKey(0)
    k_x, k_p = jax.random.split(key)
    x = jax.random.normal(k_x, (B, IN_PLANES, H, W), dtype=jnp.float32)
    params = init_params(k_p)
    fused = fuse_params(params, H * W)

    outs = attention_forward(x, fused)
    outs = jax.block_until_ready(outs)

    channel_att, filter_att, spatial_att, kernel_att = outs
    assert channel_att.shape == (B, IN_PLANES, 1, 1)
    assert filter_att.shape == (B, OUT_PLANES, 1, 1)
    assert spatial_att.shape == (B, 1, 1, 1, KERNEL_SIZE, KERNEL_SIZE)
    assert kernel_att.shape == (B, KERNEL_NUM, 1, 1, 1, 1)
    # sigmoids in (0, 1)
    assert bool(jnp.all((channel_att > 0) & (channel_att < 1)))
    assert bool(jnp.all((filter_att > 0) & (filter_att < 1)))
    assert bool(jnp.all((spatial_att > 0) & (spatial_att < 1)))
    # softmax rows sum to 1 (exact divide -> f32-precision sums)
    assert jnp.allclose(jnp.sum(kernel_att, axis=1), 1.0, atol=1e-5)

    print("KERNEL_OK")
</pallas_src>

<mosaic_0001>
module attributes {stable_mosaic.version = 11 : i64} {
  func.func @attention_kernel(%arg0: memref<2x1024xbf16, #tpu.memory_space<vmem>>, %arg1: memref<1024x16xbf16, #tpu.memory_space<vmem>>, %arg2: memref<16x128xf32, #tpu.memory_space<vmem>>, %arg3: memref<1x128xf32, #tpu.memory_space<vmem>>, %arg4: memref<2x128xf32, #tpu.memory_space<vmem>>) attributes {dimension_semantics = [], scalar_prefetch = 0 : i64, scratch_operands = 0 : i64, tpu.core_type = #tpu.core_type<tc>} {
    %c0 = arith.constant 0 : index
    %c0_0 = arith.constant 0 : index
    %0 = vector.load %arg0[%c0, %c0_0] : memref<2x1024xbf16, #tpu.memory_space<vmem>>, vector<2x1024xbf16>
    %c0_1 = arith.constant 0 : index
    %c0_2 = arith.constant 0 : index
    %1 = vector.load %arg1[%c0_1, %c0_2] : memref<1024x16xbf16, #tpu.memory_space<vmem>>, vector<1024x16xbf16>
    %cst = arith.constant dense<0.000000e+00> : vector<2x16xf32>
    %2 = tpu.matmul %0, %1, %cst {dimension_numbers = #tpu.dot_dimension_numbers<[1], [0], [0], [1], [0, 0, 1, 1], [], []>} : vector<2x1024xbf16>, vector<1024x16xbf16>, vector<2x16xf32> -> vector<2x16xf32>
    %cst_3 = arith.constant dense<0.000000e+00> : vector<16xf32>
    %3 = vector.multi_reduction <add>, %2, %cst_3 [0] : vector<2x16xf32> to vector<16xf32>
    %4 = vector.shape_cast %3 : vector<16xf32> to vector<1x16xf32>
    %cst_4 = arith.constant 2.000000e+00 : f32
    %5 = vector.broadcast %cst_4 : f32 to vector<1x16xf32>
    %6 = arith.divf %4, %5 : vector<1x16xf32>
    %7 = vector.broadcast %6 : vector<1x16xf32> to vector<2x16xf32>
    %8 = arith.subf %2, %7 : vector<2x16xf32>
    %9 = arith.mulf %8, %8 : vector<2x16xf32>
    %cst_5 = arith.constant dense<0.000000e+00> : vector<16xf32>
    %10 = vector.multi_reduction <add>, %9, %cst_5 [0] : vector<2x16xf32> to vector<16xf32>
    %11 = vector.shape_cast %10 : vector<16xf32> to vector<1x16xf32>
    %cst_6 = arith.constant 2.000000e+00 : f32
    %12 = vector.broadcast %cst_6 : f32 to vector<1x16xf32>
    %13 = arith.divf %11, %12 : vector<1x16xf32>
    %cst_7 = arith.constant 9.99999974E-6 : f32
    %14 = vector.broadcast %cst_7 : f32 to vector<1x16xf32>
    %15 = arith.addf %13, %14 : vector<1x16xf32>
    %16 = math.rsqrt %15 : vector<1x16xf32>
    %17 = vector.broadcast %16 : vector<1x16xf32> to vector<2x16xf32>
    %18 = arith.mulf %8, %17 : vector<2x16xf32>
    %cst_8 = arith.constant 0.000000e+00 : f32
    %19 = vector.broadcast %cst_8 : f32 to vector<2x16xf32>
    %20 = arith.maximumf %18, %19 : vector<2x16xf32>
    %c0_9 = arith.constant 0 : index
    %c0_10 = arith.constant 0 : index
    %21 = vector.load %arg2[%c0_9, %c0_10] : memref<16x128xf32, #tpu.memory_space<vmem>>, vector<16x128xf32>
    %cst_11 = arith.constant dense<0.000000e+00> : vector<2x128xf32>
    %22 = tpu.matmul %20, %21, %cst_11 {dimension_numbers = #tpu.dot_dimension_numbers<[1], [0], [0], [1], [0, 0, 1, 1], [], []>} : vector<2x16xf32>, vector<16x128xf32>, vector<2x128xf32> -> vector<2x128xf32>
    %c0_12 = arith.constant 0 : index
    %c0_13 = arith.constant 0 : index
    %23 = vector.load %arg3[%c0_12, %c0_13] : memref<1x128xf32, #tpu.memory_space<vmem>>, vector<1x128xf32>
    %24 = vector.broadcast %23 : vector<1x128xf32> to vector<2x128xf32>
    %25 = arith.addf %22, %24 : vector<2x128xf32>
    %26 = tpu.iota {dimensions = array<i32: 1>} : vector<2x128xi32>
    %c21_i32 = arith.constant 21 : i32
    %27 = vector.broadcast %c21_i32 : i32 to vector<2x128xi32>
    %28 = arith.cmpi sge, %26, %27 : vector<2x128xi32>
    %c25_i32 = arith.constant 25 : i32
    %29 = vector.broadcast %c25_i32 : i32 to vector<2x128xi32>
    %30 = arith.cmpi slt, %26, %29 : vector<2x128xi32>
    %31 = arith.andi %28, %30 : vector<2x128xi1>
    %cst_14 = arith.constant 0xFF800000 : f32
    %32 = vector.broadcast %cst_14 : f32 to vector<2x128xf32>
    %33 = arith.select %31, %25, %32 : vector<2x128xi1>, vector<2x128xf32>
    %cst_15 = arith.constant dense<0xFF800000> : vector<2xf32>
    %34 = vector.multi_reduction <maximumf>, %33, %cst_15 [1] : vector<2x128xf32> to vector<2xf32>
    %35 = vector.shape_cast %34 : vector<2xf32> to vector<2x1xf32>
    %36 = vector.broadcast %35 : vector<2x1xf32> to vector<2x128xf32>
    %37 = arith.subf %33, %36 : vector<2x128xf32>
    %38 = math.exp %37 : vector<2x128xf32>
    %cst_16 = arith.constant dense<0.000000e+00> : vector<2xf32>
    %39 = vector.multi_reduction <add>, %38, %cst_16 [1] : vector<2x128xf32> to vector<2xf32>
    %40 = vector.shape_cast %39 : vector<2xf32> to vector<2x1xf32>
    %41 = vector.broadcast %40 : vector<2x1xf32> to vector<2x128xf32>
    %42 = arith.divf %38, %41 : vector<2x128xf32>
    %43 = arith.negf %25 : vector<2x128xf32>
    %44 = math.exp %43 : vector<2x128xf32>
    %cst_17 = arith.constant 1.000000e+00 : f32
    %45 = vector.broadcast %cst_17 : f32 to vector<2x128xf32>
    %46 = arith.addf %45, %44 : vector<2x128xf32>
    %47 = arith.divf %45, %46 : vector<2x128xf32>
    %48 = arith.select %31, %42, %47 : vector<2x128xi1>, vector<2x128xf32>
    %c0_18 = arith.constant 0 : index
    %c0_19 = arith.constant 0 : index
    %49 = vector.load %arg4[%c0_18, %c0_19] : memref<2x128xf32, #tpu.memory_space<vmem>>, vector<2x128xf32>
    tpu.vector_store %arg4[%c0_18, %c0_19], %48 {strides = array<i32>} : memref<2x128xf32, #tpu.memory_space<vmem>>, vector<2x128xf32>,
    return
  }
}

</mosaic_0001>

<llo_original>
// kernel: tpu_custom_call.1
$region0: #{tpu_custom_call.1}
  #allocation0 [shape = 'u32[]', space=smem, size = 0x4, offset = 0x4, fixed_abs, tag = 'smem constant byte address 0x4 - core index']
  #allocation1 [shape = 'u32[144,128]{1,0:T(1,128)}', space=vmem, size = 0x12000, scoped, tag = 'internal scratch']
  %s0 = inlined_call_operand.vmem [shape: bf16[2,1024], index: 0, kind: input, shape index: {}]
  %s1 = inlined_call_operand.vmem [shape: bf16[1024,16], index: 1, kind: input, shape index: {}]
  %s2 = inlined_call_operand.vmem [shape: f32[16,128], index: 2, kind: input, shape index: {}]
  %s3 = inlined_call_operand.vmem [shape: f32[1,128], index: 3, kind: input, shape index: {}]
  %s4 = inlined_call_operand.hbm [shape: f32[2,128], index: 4, kind: output, shape index: {}]
  %s5 = sld [smem:[#allocation0]]
  $region26: #{tpu_custom_call.1} parent=0
    _
  %s7 = ssub.s32 1, %s5
  %s8 = scalar_select 0, %s7, %s5
  $region1: #{tpu_custom_call.1} parent=0
    #allocation2 [shape = 'u8[1024]{0}', space=vmem, size = 0x400, scoped, tag = 'output window, operand 0, single buffered']
    #allocation3 [shape = 's32[1]{0}', space=sflag, size = 0x4, scoped, tag = 'scoped memory for tpu_custom_call.1']
    %9 = vsyncpa [#allocation3], 0
    // Predicated region
    $region2: #{tpu_custom_call.1} parent=1 // pred_check
      _
    $region3: #{tpu_custom_call.1} parent=1 // pred_check_branch
      %11 = sbr.rel (0) target = $region5
    $region4: #{tpu_custom_call.1} parent=1 // pred_region
      _
    $region5: #{tpu_custom_call.1} parent=1 // pred_fallthru
      _
    // Predicated region
    $region6: #{tpu_custom_call.1} parent=1 // pred_check
      _
    $region7: #{tpu_custom_call.1} parent=1 // pred_check_branch
      %13 = sbr.rel (0) target = $region9
    $region8: #{tpu_custom_call.1} parent=1 // pred_region
      _
    $region9: #{tpu_custom_call.1} parent=1 // pred_fallthru
      _
    // Predicated region
    $region10: #{tpu_custom_call.1} parent=1 // pred_check
      _
    $region11: #{tpu_custom_call.1} parent=1 // pred_check_branch
      %15 = sbr.rel (0) target = $region13
    $region12: #{tpu_custom_call.1} parent=1 // pred_region
      _
    $region13: #{tpu_custom_call.1} parent=1 // pred_fallthru
      _
    // Predicated region
    $region14: #{tpu_custom_call.1} parent=1 // pred_check
      _
    $region15: #{tpu_custom_call.1} parent=1 // pred_check_branch
      %17 = sbr.rel (0) target = $region17
    $region16: #{tpu_custom_call.1} parent=1 // pred_region
      _
    $region17: #{tpu_custom_call.1} parent=1 // pred_fallthru
      _
    %v19 = vld [vmem:[%s0] sm:$0xff]
    %v20 = vld [vmem:[%s1] sm:$0xf]
    %v21 = vld [vmem:[%s1 + $0x4] sm:$0xf]
    %v22 = vld [vmem:[%s1 + $0x8] sm:$0xf]
    %v23 = vld [vmem:[%s1 + $0xc] sm:$0xf]
    %v24 = vld [vmem:[%s1 + $0x10] sm:$0xf]
    %v25 = vld [vmem:[%s1 + $0x14] sm:$0xf]
    %v26 = vld [vmem:[%s1 + $0x18] sm:$0xf]
    %v27 = vld [vmem:[%s1 + $0x1c] sm:$0xf]
    %v28 = vld [vmem:[%s1 + $0x20] sm:$0xf]
    %v29 = vld [vmem:[%s1 + $0x24] sm:$0xf]
    %v30 = vld [vmem:[%s1 + $0x28] sm:$0xf]
    %v31 = vld [vmem:[%s1 + $0x2c] sm:$0xf]
    %v32 = vld [vmem:[%s1 + $0x30] sm:$0xf]
    %v33 = vld [vmem:[%s1 + $0x34] sm:$0xf]
    %v34 = vld [vmem:[%s1 + $0x38] sm:$0xf]
    %v35 = vld [vmem:[%s1 + $0x3c] sm:$0xf]
    %v36 = vld [vmem:[%s1 + $0x40] sm:$0xf]
    %v37 = vld [vmem:[%s1 + $0x44] sm:$0xf]
    %v38 = vld [vmem:[%s1 + $0x48] sm:$0xf]
    %v39 = vld [vmem:[%s1 + $0x4c] sm:$0xf]
    %v40 = vld [vmem:[%s1 + $0x50] sm:$0xf]
    %v41 = vld [vmem:[%s1 + $0x54] sm:$0xf]
    %v42 = vld [vmem:[%s1 + $0x58] sm:$0xf]
    %v43 = vld [vmem:[%s1 + $0x5c] sm:$0xf]
    %v44 = vld [vmem:[%s1 + $0x60] sm:$0xf]
    %v45 = vld [vmem:[%s1 + $0x64] sm:$0xf]
    %v46 = vld [vmem:[%s1 + $0x68] sm:$0xf]
    %v47 = vld [vmem:[%s1 + $0x6c] sm:$0xf]
    %v48 = vld [vmem:[%s1 + $0x70] sm:$0xf]
    %v49 = vld [vmem:[%s1 + $0x74] sm:$0xf]
    %v50 = vld [vmem:[%s1 + $0x78] sm:$0xf]
    %v51 = vld [vmem:[%s1 + $0x7c] sm:$0xf]
    %v52 = vld [vmem:[%s1 + $0x80] sm:$0xf]
    %v53 = vld [vmem:[%s1 + $0x84] sm:$0xf]
    %v54 = vld [vmem:[%s1 + $0x88] sm:$0xf]
    %v55 = vld [vmem:[%s1 + $0x8c] sm:$0xf]
    %v56 = vld [vmem:[%s1 + $0x90] sm:$0xf]
    %v57 = vld [vmem:[%s1 + $0x94] sm:$0xf]
    %v58 = vld [vmem:[%s1 + $0x98] sm:$0xf]
    %v59 = vld [vmem:[%s1 + $0x9c] sm:$0xf]
    %v60 = vld [vmem:[%s1 + $0xa0] sm:$0xf]
    %v61 = vld [vmem:[%s1 + $0xa4] sm:$0xf]
    %v62 = vld [vmem:[%s1 + $0xa8] sm:$0xf]
    %v63 = vld [vmem:[%s1 + $0xac] sm:$0xf]
    %v64 = vld [vmem:[%s1 + $0xb0] sm:$0xf]
    %v65 = vld [vmem:[%s1 + $0xb4] sm:$0xf]
    %v66 = vld [vmem:[%s1 + $0xb8] sm:$0xf]
    %v67 = vld [vmem:[%s1 + $0xbc] sm:$0xf]
    %v68 = vld [vmem:[%s1 + $0xc0] sm:$0xf]
    %v69 = vld [vmem:[%s1 + $0xc4] sm:$0xf]
    %v70 = vld [vmem:[%s1 + $0xc8] sm:$0xf]
    %v71 = vld [vmem:[%s1 + $0xcc] sm:$0xf]
    %v72 = vld [vmem:[%s1 + $0xd0] sm:$0xf]
    %v73 = vld [vmem:[%s1 + $0xd4] sm:$0xf]
    %v74 = vld [vmem:[%s1 + $0xd8] sm:$0xf]
    %v75 = vld [vmem:[%s1 + $0xdc] sm:$0xf]
    %v76 = vld [vmem:[%s1 + $0xe0] sm:$0xf]
    %v77 = vld [vmem:[%s1 + $0xe4] sm:$0xf]
    %v78 = vld [vmem:[%s1 + $0xe8] sm:$0xf]
    %v79 = vld [vmem:[%s1 + $0xec] sm:$0xf]
    %v80 = vld [vmem:[%s1 + $0xf0] sm:$0xf]
    %v81 = vld [vmem:[%s1 + $0xf4] sm:$0xf]
    %v82 = vld [vmem:[%s1 + $0xf8] sm:$0xf]
    %v83 = vld [vmem:[%s1 + $0xfc] sm:$0xf]
    %v84 = vld [vmem:[%s1 + $0x100] sm:$0xf]
    %v85 = vld [vmem:[%s1 + $0x104] sm:$0xf]
    %v86 = vld [vmem:[%s1 + $0x108] sm:$0xf]
    %v87 = vld [vmem:[%s1 + $0x10c] sm:$0xf]
    %v88 = vld [vmem:[%s1 + $0x110] sm:$0xf]
    %v89 = vld [vmem:[%s1 + $0x114] sm:$0xf]
    %v90 = vld [vmem:[%s1 + $0x118] sm:$0xf]
    %v91 = vld [vmem:[%s1 + $0x11c] sm:$0xf]
    %v92 = vld [vmem:[%s1 + $0x120] sm:$0xf]
    %v93 = vld [vmem:[%s1 + $0x124] sm:$0xf]
    %v94 = vld [vmem:[%s1 + $0x128] sm:$0xf]
    %v95 = vld [vmem:[%s1 + $0x12c] sm:$0xf]
    %v96 = vld [vmem:[%s1 + $0x130] sm:$0xf]
    %v97 = vld [vmem:[%s1 + $0x134] sm:$0xf]
    %v98 = vld [vmem:[%s1 + $0x138] sm:$0xf]
    %v99 = vld [vmem:[%s1 + $0x13c] sm:$0xf]
    %v100 = vld [vmem:[%s1 + $0x140] sm:$0xf]
    %v101 = vld [vmem:[%s1 + $0x144] sm:$0xf]
    %v102 = vld [vmem:[%s1 + $0x148] sm:$0xf]
    %v103 = vld [vmem:[%s1 + $0x14c] sm:$0xf]
    %v104 = vld [vmem:[%s1 + $0x150] sm:$0xf]
    %v105 = vld [vmem:[%s1 + $0x154] sm:$0xf]
    %v106 = vld [vmem:[%s1 + $0x158] sm:$0xf]
    %v107 = vld [vmem:[%s1 + $0x15c] sm:$0xf]
    %v108 = vld [vmem:[%s1 + $0x160] sm:$0xf]
    %v109 = vld [vmem:[%s1 + $0x164] sm:$0xf]
    %v110 = vld [vmem:[%s1 + $0x168] sm:$0xf]
    %v111 = vld [vmem:[%s1 + $0x16c] sm:$0xf]
    %v112 = vld [vmem:[%s1 + $0x170] sm:$0xf]
    %v113 = vld [vmem:[%s1 + $0x174] sm:$0xf]
    %v114 = vld [vmem:[%s1 + $0x178] sm:$0xf]
    %v115 = vld [vmem:[%s1 + $0x17c] sm:$0xf]
    %v116 = vld [vmem:[%s1 + $0x180] sm:$0xf]
    %v117 = vld [vmem:[%s1 + $0x184] sm:$0xf]
    %v118 = vld [vmem:[%s1 + $0x188] sm:$0xf]
    %v119 = vld [vmem:[%s1 + $0x18c] sm:$0xf]
    %v120 = vld [vmem:[%s1 + $0x190] sm:$0xf]
    %v121 = vld [vmem:[%s1 + $0x194] sm:$0xf]
    %v122 = vld [vmem:[%s1 + $0x198] sm:$0xf]
    %v123 = vld [vmem:[%s1 + $0x19c] sm:$0xf]
    %v124 = vld [vmem:[%s1 + $0x1a0] sm:$0xf]
    %v125 = vld [vmem:[%s1 + $0x1a4] sm:$0xf]
    %v126 = vld [vmem:[%s1 + $0x1a8] sm:$0xf]
    %v127 = vld [vmem:[%s1 + $0x1ac] sm:$0xf]
    %v128 = vld [vmem:[%s1 + $0x1b0] sm:$0xf]
    %v129 = vld [vmem:[%s1 + $0x1b4] sm:$0xf]
    %v130 = vld [vmem:[%s1 + $0x1b8] sm:$0xf]
    %v131 = vld [vmem:[%s1 + $0x1bc] sm:$0xf]
    %v132 = vld [vmem:[%s1 + $0x1c0] sm:$0xf]
    %v133 = vld [vmem:[%s1 + $0x1c4] sm:$0xf]
    %v134 = vld [vmem:[%s1 + $0x1c8] sm:$0xf]
    %v135 = vld [vmem:[%s1 + $0x1cc] sm:$0xf]
    %v136 = vld [vmem:[%s1 + $0x1d0] sm:$0xf]
    %v137 = vld [vmem:[%s1 + $0x1d4] sm:$0xf]
    %v138 = vld [vmem:[%s1 + $0x1d8] sm:$0xf]
    %v139 = vld [vmem:[%s1 + $0x1dc] sm:$0xf]
    %v140 = vld [vmem:[%s1 + $0x1e0] sm:$0xf]
    %v141 = vld [vmem:[%s1 + $0x1e4] sm:$0xf]
    %v142 = vld [vmem:[%s1 + $0x1e8] sm:$0xf]
    %v143 = vld [vmem:[%s1 + $0x1ec] sm:$0xf]
    %v144 = vld [vmem:[%s1 + $0x1f0] sm:$0xf]
    %v145 = vld [vmem:[%s1 + $0x1f4] sm:$0xf]
    %v146 = vld [vmem:[%s1 + $0x1f8] sm:$0xf]
    %v147 = vld [vmem:[%s1 + $0x1fc] sm:$0xf]
    %v149 = vcombine.high %v19, %v19
    %v151 = vunpack.c.l.s4 1966171168
    %v152 = vunpack.c.0.s8 %v151
    %v153 = vlaneseq
    %v154 = vshrl.u32 %v153, 7
    %v155 = vsub.s32 %v152, %v154
    %v156 = vrot.slane %v19, %v155
    %v158 = vunpack.c.l.s4 1966171168
    %v159 = vunpack.c.0.s8 %v158
    %v160 = vlaneseq
    %v161 = vshrl.u32 %v160, 7
    %v162 = vsub.s32 %v159, %v161
    %v163 = vrot.slane %v149, %v162
    %v164 = vcombine.high %v156, %v156
    %v165 = vcombine.high %v163, %v163
    %v167 = vunpack.c.l.s4 1966171168
    %v168 = vunpack.c.0.s8 %v167
    %v169 = vlaneseq
    %v170 = vshrl.u32 %v169, 7
    %v171 = vsub.s32 %v168, %v170
    %v172 = vrot.slane %v156, %v171
    %v174 = vunpack.c.l.s4 1966171168
    %v175 = vunpack.c.0.s8 %v174
    %v176 = vlaneseq
    %v177 = vshrl.u32 %v176, 7
    %v178 = vsub.s32 %v175, %v177
    %v179 = vrot.slane %v163, %v178
    %v181 = vunpack.c.l.s4 1966171168
    %v182 = vunpack.c.0.s8 %v181
    %v183 = vlaneseq
    %v184 = vshrl.u32 %v183, 7
    %v185 = vsub.s32 %v182, %v184
    %v186 = vrot.slane %v164, %v185
    %v188 = vunpack.c.l.s4 1966171168
    %v189 = vunpack.c.0.s8 %v188
    %v190 = vlaneseq
    %v191 = vshrl.u32 %v190, 7
    %v192 = vsub.s32 %v189, %v191
    %v193 = vrot.slane %v165, %v192
    %v194 = vcombine.high %v172, %v172
    %v195 = vcombine.high %v179, %v179
    %v196 = vcombine.high %v186, %v186
    %v197 = vcombine.high %v193, %v193
    %v334 = vunpack.c.l.b16 %v20
    %v335 = vunpack.c.l.b16 %v21
    %v336 = vunpack.c.l.b16 %v22
    %v337 = vunpack.c.l.b16 %v23
    %v338 = vunpack.c.l.b16 %v24
    %v339 = vunpack.c.l.b16 %v25
    %v340 = vunpack.c.l.b16 %v26
    %v341 = vunpack.c.l.b16 %v27
    %v342 = vunpack.c.l.b16 %v28
    %v343 = vunpack.c.l.b16 %v29
    %v344 = vunpack.c.l.b16 %v30
    %v345 = vunpack.c.l.b16 %v31
    %v346 = vunpack.c.l.b16 %v32
    %v347 = vunpack.c.l.b16 %v33
    %v348 = vunpack.c.l.b16 %v34
    %v349 = vunpack.c.l.b16 %v35
    %v350 = vunpack.c.l.b16 %v36
    %v351 = vunpack.c.l.b16 %v37
    %v352 = vunpack.c.l.b16 %v38
    %v353 = vunpack.c.l.b16 %v39
    %v354 = vunpack.c.l.b16 %v40
    %v355 = vunpack.c.l.b16 %v41
    %v356 = vunpack.c.l.b16 %v42
    %v357 = vunpack.c.l.b16 %v43
    %v358 = vunpack.c.l.b16 %v44
    %v359 = vunpack.c.l.b16 %v45
    %v360 = vunpack.c.l.b16 %v46
    %v361 = vunpack.c.l.b16 %v47
    %v362 = vunpack.c.l.b16 %v48
    %v363 = vunpack.c.l.b16 %v49
    %v364 = vunpack.c.l.b16 %v50
    %v365 = vunpack.c.l.b16 %v51
    %v366 = vunpack.c.l.b16 %v52
    %v367 = vunpack.c.l.b16 %v53
    %v368 = vunpack.c.l.b16 %v54
    %v369 = vunpack.c.l.b16 %v55
    %v370 = vunpack.c.l.b16 %v56
    %v371 = vunpack.c.l.b16 %v57
    %v372 = vunpack.c.l.b16 %v58
    %v373 = vunpack.c.l.b16 %v59
    %v374 = vunpack.c.l.b16 %v60
    %v375 = vunpack.c.l.b16 %v61
    %v376 = vunpack.c.l.b16 %v62
    %v377 = vunpack.c.l.b16 %v63
    %v378 = vunpack.c.l.b16 %v64
    %v379 = vunpack.c.l.b16 %v65
    %v380 = vunpack.c.l.b16 %v66
    %v381 = vunpack.c.l.b16 %v67
    %v382 = vunpack.c.l.b16 %v68
    %v383 = vunpack.c.l.b16 %v69
    %v384 = vunpack.c.l.b16 %v70
    %v385 = vunpack.c.l.b16 %v71
    %v386 = vunpack.c.l.b16 %v72
    %v387 = vunpack.c.l.b16 %v73
    %v388 = vunpack.c.l.b16 %v74
    %v389 = vunpack.c.l.b16 %v75
    %v390 = vunpack.c.l.b16 %v76
    %v391 = vunpack.c.l.b16 %v77
    %v392 = vunpack.c.l.b16 %v78
    %v393 = vunpack.c.l.b16 %v79
    %v394 = vunpack.c.l.b16 %v80
    %v395 = vunpack.c.l.b16 %v81
    %v396 = vunpack.c.l.b16 %v82
    %v397 = vunpack.c.l.b16 %v83
    %v398 = vunpack.c.l.b16 %v84
    %v399 = vunpack.c.l.b16 %v85
    %v400 = vunpack.c.l.b16 %v86
    %v401 = vunpack.c.l.b16 %v87
    %v402 = vunpack.c.l.b16 %v88
    %v403 = vunpack.c.l.b16 %v89
    %v404 = vunpack.c.l.b16 %v90
    %v405 = vunpack.c.l.b16 %v91
    %v406 = vunpack.c.l.b16 %v92
    %v407 = vunpack.c.l.b16 %v93
    %v408 = vunpack.c.l.b16 %v94
    %v409 = vunpack.c.l.b16 %v95
    %v410 = vunpack.c.l.b16 %v96
    %v411 = vunpack.c.l.b16 %v97
    %v412 = vunpack.c.l.b16 %v98
    %v413 = vunpack.c.l.b16 %v99
    %v414 = vunpack.c.l.b16 %v100
    %v415 = vunpack.c.l.b16 %v101
    %v416 = vunpack.c.l.b16 %v102
    %v417 = vunpack.c.l.b16 %v103
    %v418 = vunpack.c.l.b16 %v104
    %v419 = vunpack.c.l.b16 %v105
    %v420 = vunpack.c.l.b16 %v106
    %v421 = vunpack.c.l.b16 %v107
    %v422 = vunpack.c.l.b16 %v108
    %v423 = vunpack.c.l.b16 %v109
    %v424 = vunpack.c.l.b16 %v110
    %v425 = vunpack.c.l.b16 %v111
    %v426 = vunpack.c.l.b16 %v112
    %v427 = vunpack.c.l.b16 %v113
    %v428 = vunpack.c.l.b16 %v114
    %v429 = vunpack.c.l.b16 %v115
    %v430 = vunpack.c.l.b16 %v116
    %v431 = vunpack.c.l.b16 %v117
    %v432 = vunpack.c.l.b16 %v118
    %v433 = vunpack.c.l.b16 %v119
    %v434 = vunpack.c.l.b16 %v120
    %v435 = vunpack.c.l.b16 %v121
    %v436 = vunpack.c.l.b16 %v122
    %v437 = vunpack.c.l.b16 %v123
    %v438 = vunpack.c.l.b16 %v124
    %v439 = vunpack.c.l.b16 %v125
    %v440 = vunpack.c.l.b16 %v126
    %v441 = vunpack.c.l.b16 %v127
    %v442 = vunpack.c.l.b16 %v128
    %v443 = vunpack.c.l.b16 %v129
    %v444 = vunpack.c.l.b16 %v130
    %v445 = vunpack.c.l.b16 %v131
    %v446 = vunpack.c.l.b16 %v132
    %v447 = vunpack.c.l.b16 %v133
    %v448 = vunpack.c.l.b16 %v134
    %v449 = vunpack.c.l.b16 %v135
    %v450 = vunpack.c.l.b16 %v136
    %v451 = vunpack.c.l.b16 %v137
    %v452 = vunpack.c.l.b16 %v138
    %v453 = vunpack.c.l.b16 %v139
    %v454 = vunpack.c.l.b16 %v140
    %v455 = vunpack.c.l.b16 %v141
    %v456 = vunpack.c.l.b16 %v142
    %v457 = vunpack.c.l.b16 %v143
    %v458 = vunpack.c.l.b16 %v144
    %v459 = vunpack.c.l.b16 %v145
    %v460 = vunpack.c.l.b16 %v146
    %v461 = vunpack.c.l.b16 %v147
    %v462 = vpack.c.b16 %v335, %v334
    %v463 = vpack.c.b16 %v337, %v336
    %v464 = vpack.c.b16 %v339, %v338
    %v465 = vpack.c.b16 %v341, %v340
    %v466 = vpack.c.b16 %v343, %v342
    %v467 = vpack.c.b16 %v345, %v344
    %v468 = vpack.c.b16 %v347, %v346
    %v469 = vpack.c.b16 %v349, %v348
    %v470 = vpack.c.b16 %v351, %v350
    %v471 = vpack.c.b16 %v353, %v352
    %v472 = vpack.c.b16 %v355, %v354
    %v473 = vpack.c.b16 %v357, %v356
    %v474 = vpack.c.b16 %v359, %v358
    %v475 = vpack.c.b16 %v361, %v360
    %v476 = vpack.c.b16 %v363, %v362
    %v477 = vpack.c.b16 %v365, %v364
    %v478 = vpack.c.b16 %v367, %v366
    %v479 = vpack.c.b16 %v369, %v368
    %v480 = vpack.c.b16 %v371, %v370
    %v481 = vpack.c.b16 %v373, %v372
    %v482 = vpack.c.b16 %v375, %v374
    %v483 = vpack.c.b16 %v377, %v376
    %v484 = vpack.c.b16 %v379, %v378
    %v485 = vpack.c.b16 %v381, %v380
    %v486 = vpack.c.b16 %v383, %v382
    %v487 = vpack.c.b16 %v385, %v384
    %v488 = vpack.c.b16 %v387, %v386
    %v489 = vpack.c.b16 %v389, %v388
    %v490 = vpack.c.b16 %v391, %v390
    %v491 = vpack.c.b16 %v393, %v392
    %v492 = vpack.c.b16 %v395, %v394
    %v493 = vpack.c.b16 %v397, %v396
    %v494 = vpack.c.b16 %v399, %v398
    %v495 = vpack.c.b16 %v401, %v400
    %v496 = vpack.c.b16 %v403, %v402
    %v497 = vpack.c.b16 %v405, %v404
    %v498 = vpack.c.b16 %v407, %v406
    %v499 = vpack.c.b16 %v409, %v408
    %v500 = vpack.c.b16 %v411, %v410
    %v501 = vpack.c.b16 %v413, %v412
    %v502 = vpack.c.b16 %v415, %v414
    %v503 = vpack.c.b16 %v417, %v416
    %v504 = vpack.c.b16 %v419, %v418
    %v505 = vpack.c.b16 %v421, %v420
    %v506 = vpack.c.b16 %v423, %v422
    %v507 = vpack.c.b16 %v425, %v424
    %v508 = vpack.c.b16 %v427, %v426
    %v509 = vpack.c.b16 %v429, %v428
    %v510 = vpack.c.b16 %v431, %v430
    %v511 = vpack.c.b16 %v433, %v432
    %v512 = vpack.c.b16 %v435, %v434
    %v513 = vpack.c.b16 %v437, %v436
    %v514 = vpack.c.b16 %v439, %v438
    %v515 = vpack.c.b16 %v441, %v440
    %v516 = vpack.c.b16 %v443, %v442
    %v517 = vpack.c.b16 %v445, %v444
    %v518 = vpack.c.b16 %v447, %v446
    %v519 = vpack.c.b16 %v449, %v448
    %v520 = vpack.c.b16 %v451, %v450
    %v521 = vpack.c.b16 %v453, %v452
    %v522 = vpack.c.b16 %v455, %v454
    %v523 = vpack.c.b16 %v457, %v456
    %v524 = vpack.c.b16 %v459, %v458
    %v525 = vpack.c.b16 %v461, %v460
    %590 = vmatprep.subr.bf16.mxu0 0
    %591 = vmatpush1.bf16.msra.mxu0 %v462
    %592 = vmatprep.subr.bf16.mxu0 0
    %593 = vmatpush1.bf16.msra.mxu0 %v463
    %594 = vmatprep.subr.bf16.mxu0 0
    %595 = vmatpush1.bf16.msra.mxu0 %v464
    %596 = vmatprep.subr.bf16.mxu0 0
    %597 = vmatpush1.bf16.msra.mxu0 %v465
    %598 = vmatprep.subr.bf16.mxu0 0
    %599 = vmatpush1.bf16.msra.mxu0 %v466
    %600 = vmatprep.subr.bf16.mxu0 0
    %601 = vmatpush1.bf16.msra.mxu0 %v467
    %602 = vmatprep.subr.bf16.mxu0 0
    %603 = vmatpush1.bf16.msra.mxu0 %v468
    %604 = vmatprep.subr.bf16.mxu0 0
    %605 = vmatpush1.bf16.msra.mxu0 %v469
    %606 = vmatprep.subr.bf16.mxu0 0
    %607 = vmatpush1.bf16.msra.mxu0 %v470
    %608 = vmatprep.subr.bf16.mxu0 0
    %609 = vmatpush1.bf16.msra.mxu0 %v471
    %610 = vmatprep.subr.bf16.mxu0 0
    %611 = vmatpush1.bf16.msra.mxu0 %v472
    %612 = vmatprep.subr.bf16.mxu0 0
    %613 = vmatpush1.bf16.msra.mxu0 %v473
    %614 = vmatprep.subr.bf16.mxu0 0
    %615 = vmatpush1.bf16.msra.mxu0 %v474
    %616 = vmatprep.subr.bf16.mxu0 0
    %617 = vmatpush1.bf16.msra.mxu0 %v475
    %618 = vmatprep.subr.bf16.mxu0 0
    %619 = vmatpush1.bf16.msra.mxu0 %v476
    %620 = vmatprep.subr.bf16.mxu0 0
    %621 = vmatpush1.bf16.msra.mxu0 %v477
    %622 = vmatprep.mubr.bf16.mxu0 %v186
    %623 = vmatmul.mubr.bf16.gmra.mrb[0].mxu0 %v172
    %v624 = vpop.f32.mrb[0].mxu0
    %v625 = vadd.f32 0.0, %v624
    %v626 = vpop.f32.mrb[0].mxu0
    %v627 = vpop.f32.mrb[0].mxu0
    %v628 = vpop.f32.mrb[0].mxu0
    %629 = vdwg.mxu0
    %630 = vmatprep.subr.bf16.mxu0 0
    %631 = vmatpush1.bf16.msra.mxu0 %v478
    %632 = vmatprep.subr.bf16.mxu0 0
    %633 = vmatpush1.bf16.msra.mxu0 %v479
    %634 = vmatprep.subr.bf16.mxu0 0
    %635 = vmatpush1.bf16.msra.mxu0 %v480
    %636 = vmatprep.subr.bf16.mxu0 0
    %637 = vmatpush1.bf16.msra.mxu0 %v481
    %638 = vmatprep.subr.bf16.mxu0 0
    %639 = vmatpush1.bf16.msra.mxu0 %v482
    %640 = vmatprep.subr.bf16.mxu0 0
    %641 = vmatpush1.bf16.msra.mxu0 %v483
    %642 = vmatprep.subr.bf16.mxu0 0
    %643 = vmatpush1.bf16.msra.mxu0 %v484
    %644 = vmatprep.subr.bf16.mxu0 0
    %645 = vmatpush1.bf16.msra.mxu0 %v485
    %646 = vmatprep.subr.bf16.mxu0 0
    %647 = vmatpush1.bf16.msra.mxu0 %v486
    %648 = vmatprep.subr.bf16.mxu0 0
    %649 = vmatpush1.bf16.msra.mxu0 %v487
    %650 = vmatprep.subr.bf16.mxu0 0
    %651 = vmatpush1.bf16.msra.mxu0 %v488
    %652 = vmatprep.subr.bf16.mxu0 0
    %653 = vmatpush1.bf16.msra.mxu0 %v489
    %654 = vmatprep.subr.bf16.mxu0 0
    %655 = vmatpush1.bf16.msra.mxu0 %v490
    %656 = vmatprep.subr.bf16.mxu0 0
    %657 = vmatpush1.bf16.msra.mxu0 %v491
    %658 = vmatprep.subr.bf16.mxu0 0
    %659 = vmatpush1.bf16.msra.mxu0 %v492
    %660 = vmatprep.subr.bf16.mxu0 0
    %661 = vmatpush1.bf16.msra.mxu0 %v493
    %662 = vmatprep.mubr.bf16.mxu0 %v196
    %663 = vmatmul.mubr.bf16.gmra.mrb[0].mxu0 %v194
    %v664 = vpop.f32.mrb[0].mxu0
    %v665 = vadd.f32 %v625, %v664
    %v666 = vpop.f32.mrb[0].mxu0
    %v667 = vpop.f32.mrb[0].mxu0
    %v668 = vpop.f32.mrb[0].mxu0
    %669 = vdwg.mxu0
    %670 = vmatprep.subr.bf16.mxu0 0
    %671 = vmatpush1.bf16.msra.mxu0 %v494
    %672 = vmatprep.subr.bf16.mxu0 0
    %673 = vmatpush1.bf16.msra.mxu0 %v495
    %674 = vmatprep.subr.bf16.mxu0 0
    %675 = vmatpush1.bf16.msra.mxu0 %v496
    %676 = vmatprep.subr.bf16.mxu0 0
    %677 = vmatpush1.bf16.msra.mxu0 %v497
    %678 = vmatprep.subr.bf16.mxu0 0
    %679 = vmatpush1.bf16.msra.mxu0 %v498
    %680 = vmatprep.subr.bf16.mxu0 0
    %681 = vmatpush1.bf16.msra.mxu0 %v499
    %682 = vmatprep.subr.bf16.mxu0 0
    %683 = vmatpush1.bf16.msra.mxu0 %v500
    %684 = vmatprep.subr.bf16.mxu0 0
    %685 = vmatpush1.bf16.msra.mxu0 %v501
    %686 = vmatprep.subr.bf16.mxu0 0
    %687 = vmatpush1.bf16.msra.mxu0 %v502
    %688 = vmatprep.subr.bf16.mxu0 0
    %689 = vmatpush1.bf16.msra.mxu0 %v503
    %690 = vmatprep.subr.bf16.mxu0 0
    %691 = vmatpush1.bf16.msra.mxu0 %v504
    %692 = vmatprep.subr.bf16.mxu0 0
    %693 = vmatpush1.bf16.msra.mxu0 %v505
    %694 = vmatprep.subr.bf16.mxu0 0
    %695 = vmatpush1.bf16.msra.mxu0 %v506
    %696 = vmatprep.subr.bf16.mxu0 0
    %697 = vmatpush1.bf16.msra.mxu0 %v507
    %698 = vmatprep.subr.bf16.mxu0 0
    %699 = vmatpush1.bf16.msra.mxu0 %v508
    %700 = vmatprep.subr.bf16.mxu0 0
    %701 = vmatpush1.bf16.msra.mxu0 %v509
    %702 = vmatprep.mubr.bf16.mxu0 %v193
    %703 = vmatmul.mubr.bf16.gmra.mrb[0].mxu0 %v179
    %v704 = vpop.f32.mrb[0].mxu0
    %v705 = vadd.f32 %v665, %v704
    %v706 = vpop.f32.mrb[0].mxu0
    %v707 = vpop.f32.mrb[0].mxu0
    %v708 = vpop.f32.mrb[0].mxu0
    %709 = vdwg.mxu0
    %710 = vmatprep.subr.bf16.mxu0 0
    %711 = vmatpush1.bf16.msra.mxu0 %v510
    %712 = vmatprep.subr.bf16.mxu0 0
    %713 = vmatpush1.bf16.msra.mxu0 %v511
    %714 = vmatprep.subr.bf16.mxu0 0
    %715 = vmatpush1.bf16.msra.mxu0 %v512
    %716 = vmatprep.subr.bf16.mxu0 0
    %717 = vmatpush1.bf16.msra.mxu0 %v513
    %718 = vmatprep.subr.bf16.mxu0 0
    %719 = vmatpush1.bf16.msra.mxu0 %v514
    %720 = vmatprep.subr.bf16.mxu0 0
    %721 = vmatpush1.bf16.msra.mxu0 %v515
    %722 = vmatprep.subr.bf16.mxu0 0
    %723 = vmatpush1.bf16.msra.mxu0 %v516
    %724 = vmatprep.subr.bf16.mxu0 0
    %725 = vmatpush1.bf16.msra.mxu0 %v517
    %726 = vmatprep.subr.bf16.mxu0 0
    %727 = vmatpush1.bf16.msra.mxu0 %v518
    %728 = vmatprep.subr.bf16.mxu0 0
    %729 = vmatpush1.bf16.msra.mxu0 %v519
    %730 = vmatprep.subr.bf16.mxu0 0
    %731 = vmatpush1.bf16.msra.mxu0 %v520
    %732 = vmatprep.subr.bf16.mxu0 0
    %733 = vmatpush1.bf16.msra.mxu0 %v521
    %734 = vmatprep.subr.bf16.mxu0 0
    %735 = vmatpush1.bf16.msra.mxu0 %v522
    %736 = vmatprep.subr.bf16.mxu0 0
    %737 = vmatpush1.bf16.msra.mxu0 %v523
    %738 = vmatprep.subr.bf16.mxu0 0
    %739 = vmatpush1.bf16.msra.mxu0 %v524
    %740 = vmatprep.subr.bf16.mxu0 0
    %741 = vmatpush1.bf16.msra.mxu0 %v525
    %742 = vmatprep.mubr.bf16.mxu0 %v197
    %743 = vmatmul.mubr.bf16.gmra.mrb[0].mxu0 %v195
    %v744 = vpop.f32.mrb[0].mxu0
    %v745 = vadd.f32 %v705, %v744
    %v746 = vpop.f32.mrb[0].mxu0
    %v747 = vpop.f32.mrb[0].mxu0
    %v748 = vpop.f32.mrb[0].mxu0
    %749 = vdwg.mxu0
    %vm750 = vcmask 123904
    %v751 = vsel %vm750, %v745, 0.0
    %v752 = vrot.slane %v751, 4
    %v753 = vadd.f32 %v751, %v752
    %v754 = vrot.slane %v753, 2
    %v755 = vadd.f32 %v753, %v754
    %v756 = vrot.slane %v755, 1
    %v757 = vadd.f32 %v755, %v756
    %v758 = vrcp.pop 2.0
    %v759 = vmul.f32 %v757, %v758
    %v760 = vsub.f32 %v745, %v759
    %v761 = vmul.f32 %v760, %v760
    %v762 = vsel %vm750, %v761, 0.0
    %v763 = vrot.slane %v762, 4
    %v764 = vadd.f32 %v762, %v763
    %v765 = vrot.slane %v764, 2
    %v766 = vadd.f32 %v764, %v765
    %v767 = vrot.slane %v766, 1
    %v768 = vadd.f32 %v766, %v767
    %v769 = vmul.f32 %v768, %v758
    %v770 = vadd.f32 %v769, 1e-05
    %v771 = vrsqrt.pop %v770
    %v772 = vmul.f32 %v760, %v771
    %v773 = vmax.f32 %v772, 0.0
    %v774 = vld [vmem:[%s2] sm:$0xff]
    %v775 = vld [vmem:[%s2 + $0x8] sm:$0xff]
    %v776 = vld [vmem:[%s3] sm:$0x1]
    %v778 = vlaneseq
    %v779 = vshrl.u32 %v778, 7
    %v780 = vsub.s32 0, %v779
    %v781 = vrot.slane %v776, %v780
    %vm783 = vcmask 130048
    %v785 = vsel %vm783, %v773, 0
    %787 = vmatprep.subr.mxu0 0.0
    %788 = vmatpush1.msra.mxu0 %v774
    %789 = vmatprep.subr.mxu0 0.0
    %790 = vmatpush1.msra.mxu0 %v775
    %791 = vmatprep.subr.mxu0 0.0
    %792 = vmatpush1.msra.mxu0 0.0
    %793 = vmatprep.subr.mxu0 0.0
    %794 = vmatpush1.msra.mxu0 0.0
    %795 = vmatprep.subr.mxu0 0.0
    %796 = vmatpush1.msra.mxu0 0.0
    %797 = vmatprep.subr.mxu0 0.0
    %798 = vmatpush1.msra.mxu0 0.0
    %799 = vmatprep.subr.mxu0 0.0
    %800 = vmatpush1.msra.mxu0 0.0
    %801 = vmatprep.subr.mxu0 0.0
    %802 = vmatpush1.msra.mxu0 0.0
    %803 = vmatprep.subr.mxu0 0.0
    %804 = vmatpush1.msra.mxu0 0.0
    %805 = vmatprep.subr.mxu0 0.0
    %806 = vmatpush1.msra.mxu0 0.0
    %807 = vmatprep.subr.mxu0 0.0
    %808 = vmatpush1.msra.mxu0 0.0
    %809 = vmatprep.subr.mxu0 0.0
    %810 = vmatpush1.msra.mxu0 0.0
    %811 = vmatprep.subr.mxu0 0.0
    %812 = vmatpush1.msra.mxu0 0.0
    %813 = vmatprep.subr.mxu0 0.0
    %814 = vmatpush1.msra.mxu0 0.0
    %815 = vmatprep.subr.mxu0 0.0
    %816 = vmatpush1.msra.mxu0 0.0
    %817 = vmatprep.subr.mxu0 0.0
    %818 = vmatpush1.msra.mxu0 0.0
    %819 = vmatprep.subr.mxu0 0.0
    %820 = vmatpush1.msra.mxu0 0.0
    %821 = vmatprep.subr.mxu0 0.0
    %822 = vmatpush1.msra.mxu0 0.0
    %823 = vmatprep.subr.mxu0 0.0
    %824 = vmatpush1.msra.mxu0 0.0
    %825 = vmatprep.subr.mxu0 0.0
    %826 = vmatpush1.msra.mxu0 0.0
    %827 = vmatprep.subr.mxu0 0.0
    %828 = vmatpush1.msra.mxu0 0.0
    %829 = vmatprep.subr.mxu0 0.0
    %830 = vmatpush1.msra.mxu0 0.0
    %831 = vmatprep.subr.mxu0 0.0
    %832 = vmatpush1.msra.mxu0 0.0
    %833 = vmatprep.subr.mxu0 0.0
    %834 = vmatpush1.msra.mxu0 0.0
    %835 = vmatprep.subr.mxu0 0.0
    %836 = vmatpush1.msra.mxu0 0.0
    %837 = vmatprep.subr.mxu0 0.0
    %838 = vmatpush1.msra.mxu0 0.0
    %839 = vmatprep.subr.mxu0 0.0
    %840 = vmatpush1.msra.mxu0 0.0
    %841 = vmatprep.subr.mxu0 0.0
    %842 = vmatpush1.msra.mxu0 0.0
    %843 = vmatprep.subr.mxu0 0.0
    %844 = vmatpush1.msra.mxu0 0.0
    %845 = vmatprep.subr.mxu0 0.0
    %846 = vmatpush1.msra.mxu0 0.0
    %847 = vmatprep.subr.mxu0 0.0
    %848 = vmatpush1.msra.mxu0 0.0
    %849 = vmatprep.subr.mxu0 0.0
    %850 = vmatpush1.msra.mxu0 0.0
    %851 = vmatprep.mubr.f32.mxu0 0.0
    %852 = vmatmul.mubr.f32.gmra.mrb[0].mxu0 %v785
    %v853 = vpop.f32.mrb[0].mxu0
    %v854 = vadd.f32 %v781, %v853
    %v855 = vpop.f32.mrb[0].mxu0
    %856 = vdwg.mxu0
    %v857 = vlaneseq
    %v858 = vand.u32 %v857, 127
    %vm859 = vcmp.ge.s32.totalorder %v858, 21
    %vm860 = vcmp.lt.s32.totalorder %v858, 25
    %vm861 = vmand %vm859, %vm860
    %v862 = vsel %vm861, %v854, -inf
    %vm863 = vcmask 1041408
    %v864 = vsel %vm863, %v862, -inf
    %865 = vmax.xlane.f32.xlu0 %v864
    %v866 = vpop.xlane.xlu0 %865
    %v867 = vsub.f32 %v862, %v866
    %v868 = vmul.f32 %v867, 1.442695
    %v869 = vpow.pop %v868
    %v870 = vsel %vm863, %v869, 0.0
    %871 = vadd.xlane.f32.xlu0 %v870
    %v872 = vpop.xlane.xlu0 %871
    %v873 = vrcp.pop %v872
    %v874 = vmul.f32 %v869, %v873
    %v875 = vxor.u32 %v854, 2147483648
    %v876 = vmul.f32 %v875, 1.442695
    %v877 = vpow.pop %v876
    %v878 = vadd.f32 %v877, 1.0
    %v879 = vrcp.pop %v878
    %v880 = vmul.f32 1.0, %v879
    %v881 = vsel %vm861, %v874, %v880
    %882 = vst [vmem:[#allocation2] sm:$0x3] %v881
    // Predicated region
    $region18: #{tpu_custom_call.1} parent=1 // pred_check
      _
    $region19: #{tpu_custom_call.1} parent=1 // pred_check_branch
      %884 = sbr.rel (0) target = $region21
    $region20: #{tpu_custom_call.1} parent=1 // pred_region
      %s886 = ssub.s32 32, 32
      %887 = vsyncadd [#allocation3], %s886
      %s889 = sshll.u32 [#allocation2], 4
      %s890 = int_to_ptr.vmem [resolvable:$true] %s889
      %892 = dma.vmem_to_hbm [thread:$0]  %s890, 32, %s4, [#allocation3]
    $region21: #{tpu_custom_call.1} parent=1 // pred_fallthru
      _
    // Predicated region
    $region22: #{tpu_custom_call.1} parent=1 // pred_check
      _
    $region23: #{tpu_custom_call.1} parent=1 // pred_check_branch
      %894 = sbr.rel (0) target = $region25
    $region24: #{tpu_custom_call.1} parent=1 // pred_region
      %895 = dma.done [#allocation3], 32
    $region25: #{tpu_custom_call.1} parent=1 // pred_fallthru
      _
    %896 = vsyncpa [#allocation3], 1

</llo_original>
